<compile_context>
chip_gen: v7x
topology: tpu7x:2x2x1
jax: 0.10.0
libtpu: 0.0.40
codegen_flags: <defaults>
</compile_context>

<pallas_src>
import functools

import jax
import jax.numpy as jnp
from jax.experimental import pallas as pl
from jax.experimental.pallas import tpu as pltpu


def _scaler_kernel(const_ref, x_ref, o_ref, *, mode):
    # const_ref: VMEM (TM, 2) float32; column 0 = bias[c], column 1 = scale[c].
    # x_ref / o_ref: VMEM (TM, TL) tile of the flattened (N*C, H*W) data.
    x = x_ref[...].astype(jnp.float32)
    c = const_ref[...]
    b = c[:, 0:1]                 # (TM, 1) broadcasts over lanes
    s = c[:, 1:2]
    if mode == "apply":
        y = (x - b) / s           # true divide: exact torch semantics
    else:  # 'revert'
        y = x * s + b
    o_ref[...] = y.astype(o_ref.dtype)


def _choose_block(R, L, itemsize):
    """Pick (tm, tl) for the flattened (R=N*C, L=H*W) view.

    Invariants: tl % 128 == 0 or tl == L; tm % 8 == 0 or tm == R.
    """
    sub = max(8, 32 // itemsize)          # packed-sublane granule (8/16/32)
    target_bytes = 4 * 1024 * 1024        # ~4 MiB blocks (review: v6e/v7x knee)

    # Lane axis: bound it to a lane-dense tile regardless of divisibility;
    # Pallas masks the trailing partial lane block.
    tl = L if L <= 4096 else 4096

    # Sublane axis: hit the block-byte target.
    tm = max(sub, (target_bytes // max(1, tl * itemsize)) // sub * sub)
    if tm >= R:
        tm = R                            # full-extent block: always legal

    # v7x megacore: make sure a 'parallel' axis has >= 2 blocks for any
    # non-tiny array so both TensorCores get work (no-op on v5e/v6e).
    total_bytes = R * L * itemsize
    if (total_bytes > 2 * 1024 * 1024
            and pl.cdiv(R, tm) < 2 and pl.cdiv(L, tl) < 2):
        if R > sub:
            cand = pl.cdiv(pl.cdiv(R, 2), sub) * sub
            if cand < R:
                tm = cand
        elif L > 256:
            cand = pl.cdiv(pl.cdiv(L, 2), 128) * 128
            if 128 <= cand < L:
                tl = cand
    return tm, tl


def data_scaler_forward(data, bias, scale, mode):
    """Pallas equivalent of DataScaler.forward(data, mode=mode).

    data:  (N, C, H, W)
    bias:  (1, C, 1, 1)
    scale: (1, C, 1, 1)
    """
    if mode not in ("apply", "revert"):
        raise NotImplementedError("[ERROR] Operation mode not available.")
    N, C, H, W = data.shape
    assert bias.shape == (1, C, 1, 1) and scale.shape == (1, C, 1, 1)

    R, L = N * C, H * W
    x2d = data.reshape(R, L)              # free reshape: H, W are innermost

    # Packed per-row constants: row r of the flat view is channel r % C.
    b_row = jnp.tile(bias.reshape(C).astype(jnp.float32), N)    # (R,)
    s_row = jnp.tile(scale.reshape(C).astype(jnp.float32), N)   # (R,)
    const = jnp.stack([b_row, s_row], axis=1)                   # (R, 2) f32

    itemsize = jnp.dtype(data.dtype).itemsize
    tm, tl = _choose_block(R, L, itemsize)
    grid = (pl.cdiv(R, tm), pl.cdiv(L, tl))

    # Double-buffered input + output tiles dominate the footprint.
    block_bytes = tm * tl * itemsize
    vmem_limit = min(56 << 20, 4 * block_bytes + (8 << 20))

    kernel = functools.partial(_scaler_kernel, mode=mode)
    out2d = pl.pallas_call(
        kernel,
        out_shape=jax.ShapeDtypeStruct((R, L), data.dtype),
        grid=grid,
        in_specs=[
            pl.BlockSpec((tm, 2), lambda i, j: (i, 0)),    # packed bias/scale
            pl.BlockSpec((tm, tl), lambda i, j: (i, j)),   # data tile
        ],
        out_specs=pl.BlockSpec((tm, tl), lambda i, j: (i, j)),
        compiler_params=pltpu.CompilerParams(
            # Both axes independent: lets Mosaic shard blocks across the two
            # TensorCores on v7x; harmless on single-core v5e/v6e.
            dimension_semantics=("parallel", "parallel"),
            vmem_limit_bytes=vmem_limit,
        ),
    )(const, x2d)

    return out2d.reshape(N, C, H, W)


if __name__ == "__main__":
    # Small deterministic example consistent with the module's NCHW convention.
    N, C, H, W = 2, 4, 16, 16
    key = jax.random.PRNGKey(0)
    kx, kb, ks = jax.random.split(key, 3)

    x = jax.random.normal(kx, (N, C, H, W), dtype=jnp.float32)
    # Per-channel parameters (shapes from __init__: (1, C, 1, 1)).
    bias = jax.random.normal(kb, (1, C, 1, 1), dtype=jnp.float32)
    scale = jax.random.uniform(ks, (1, C, 1, 1), dtype=jnp.float32,
                               minval=0.5, maxval=2.0)

    # mode='apply'
    y_apply = data_scaler_forward(x, bias, scale, mode="apply")
    y_apply = jax.block_until_ready(y_apply)
    ref_apply = (x - bias) / scale
    assert jnp.allclose(y_apply, ref_apply, rtol=1e-6, atol=1e-6)

    # mode='revert'
    y_revert = data_scaler_forward(y_apply, bias, scale, mode="revert")
    y_revert = jax.block_until_ready(y_revert)
    ref_revert = y_apply * scale + bias
    assert jnp.allclose(y_revert, ref_revert, rtol=1e-6, atol=1e-6)
    # Round-trip should recover the original input.
    assert jnp.allclose(y_revert, x, rtol=1e-5, atol=1e-5)

    print("KERNEL_OK")
</pallas_src>

<mosaic_0001>
module attributes {stable_mosaic.version = 11 : i64} {
  func.func @_scaler_kernel(%arg0: i32, %arg1: i32, %arg2: memref<8x2xf32, #tpu.memory_space<vmem>>, %arg3: memref<8x256xf32, #tpu.memory_space<vmem>>, %arg4: memref<8x256xf32, #tpu.memory_space<vmem>>) attributes {dimension_semantics = [#tpu.dimension_semantics<parallel>, #tpu.dimension_semantics<parallel>], iteration_bounds = array<i64: 1, 1>, scalar_prefetch = 0 : i64, scratch_operands = 0 : i64, tpu.core_type = #tpu.core_type<tc>, window_params = [{transform_indices = @transform_0, window_bounds = array<i64: 8, 2>}, {transform_indices = @transform_1, window_bounds = array<i64: 8, 256>}, {transform_indices = @transform_2, window_bounds = array<i64: 8, 256>}]} {
    %c0 = arith.constant 0 : index
    %c0_0 = arith.constant 0 : index
    %0 = vector.load %arg3[%c0, %c0_0] : memref<8x256xf32, #tpu.memory_space<vmem>>, vector<8x256xf32>
    %c0_1 = arith.constant 0 : index
    %c0_2 = arith.constant 0 : index
    %1 = vector.load %arg2[%c0_1, %c0_2] : memref<8x2xf32, #tpu.memory_space<vmem>>, vector<8x2xf32>
    %2 = vector.extract_strided_slice %1 {offsets = [0, 0], sizes = [8, 1], strides = [1, 1]} : vector<8x2xf32> to vector<8x1xf32>
    %3 = vector.extract_strided_slice %1 {offsets = [0, 1], sizes = [8, 1], strides = [1, 1]} : vector<8x2xf32> to vector<8x1xf32>
    %4 = vector.broadcast %2 : vector<8x1xf32> to vector<8x256xf32>
    %5 = arith.subf %0, %4 : vector<8x256xf32>
    %6 = vector.broadcast %3 : vector<8x1xf32> to vector<8x256xf32>
    %7 = arith.divf %5, %6 : vector<8x256xf32>
    %c0_3 = arith.constant 0 : index
    %c0_4 = arith.constant 0 : index
    %8 = vector.load %arg4[%c0_3, %c0_4] : memref<8x256xf32, #tpu.memory_space<vmem>>, vector<8x256xf32>
    tpu.vector_store %arg4[%c0_3, %c0_4], %7 {strides = array<i32>} : memref<8x256xf32, #tpu.memory_space<vmem>>, vector<8x256xf32>,
    return
  }
  func.func @transform_0(%arg0: i32, %arg1: i32) -> (i32, i32) {
    %c0_i32 = arith.constant 0 : i32
    %c0_i32_0 = arith.constant 0 : i32
    return %arg0, %c0_i32 : i32, i32
  }
  func.func @transform_1(%arg0: i32, %arg1: i32) -> (i32, i32) {
    %c0_i32 = arith.constant 0 : i32
    return %arg0, %arg1 : i32, i32
  }
  func.func @transform_2(%arg0: i32, %arg1: i32) -> (i32, i32) {
    %c0_i32 = arith.constant 0 : i32
    return %arg0, %arg1 : i32, i32
  }
}

</mosaic_0001>

<llo_original>
// kernel: tpu_custom_call.1
$region0: #{tpu_custom_call.1}
  #allocation0 [shape = 'u32[]', space=smem, size = 0x4, offset = 0x4, fixed_abs, tag = 'smem constant byte address 0x4 - core index']
  #allocation1 [shape = 'u32[144,128]{1,0:T(1,128)}', space=vmem, size = 0x12000, scoped, tag = 'internal scratch']
  %s0 = inlined_call_operand.vmem [shape: f32[8,2], index: 0, kind: input, shape index: {}]
  %s1 = inlined_call_operand.hbm [shape: f32[8,256], index: 1, kind: input, shape index: {}]
  %s2 = inlined_call_operand.hbm [shape: f32[8,256], index: 2, kind: output, shape index: {}]
  %s3 = sld [smem:[#allocation0]]
  $region22: #{tpu_custom_call.1} parent=0
    _
  %s5 = ssub.s32 1, %s3
  %s6 = scalar_select 0, %s5, %s3
  $region1: #{tpu_custom_call.1} parent=0
    #allocation2 [shape = 'u8[8192]{0}', space=vmem, size = 0x2000, scoped, tag = 'input window, operand 1, single buffered']
    #allocation3 [shape = 's32[1]{0}', space=sflag, size = 0x4, scoped, tag = 'scoped memory for tpu_custom_call.1']
    #allocation4 [shape = 's32[1]{0}', space=sflag, size = 0x4, scoped, tag = 'scoped memory for tpu_custom_call.1']
    #allocation5 [shape = 'u8[8192]{0}', space=vmem, size = 0x2000, scoped, tag = 'output window, operand 0, single buffered']
    %7 = vsyncpa [#allocation3], 0
    %8 = vsyncpa [#allocation4], 0
    // Predicated region
    $region2: #{tpu_custom_call.1} parent=1 // pred_check
      _
    $region3: #{tpu_custom_call.1} parent=1 // pred_check_branch
      %10 = sbr.rel (0) target = $region5
    $region4: #{tpu_custom_call.1} parent=1 // pred_region
      _
    $region5: #{tpu_custom_call.1} parent=1 // pred_fallthru
      _
    // Predicated region
    $region6: #{tpu_custom_call.1} parent=1 // pred_check
      _
    $region7: #{tpu_custom_call.1} parent=1 // pred_check_branch
      %12 = sbr.rel (0) target = $region9
    $region8: #{tpu_custom_call.1} parent=1 // pred_region
      %s14 = ssub.s32 256, 256
      %15 = vsyncadd [#allocation3], %s14
      %s17 = sshll.u32 [#allocation2], 4
      %s18 = int_to_ptr.vmem [resolvable:$true] %s17
      %20 = dma.hbm_to_vmem [thread:$0]  %s1, 256, %s18, [#allocation3]
    $region9: #{tpu_custom_call.1} parent=1 // pred_fallthru
      _
    // Predicated region
    $region10: #{tpu_custom_call.1} parent=1 // pred_check
      _
    $region11: #{tpu_custom_call.1} parent=1 // pred_check_branch
      %22 = sbr.rel (0) target = $region13
    $region12: #{tpu_custom_call.1} parent=1 // pred_region
      %23 = dma.done [#allocation3], 256
    $region13: #{tpu_custom_call.1} parent=1 // pred_fallthru
      _
    %v24 = vld [vmem:[#allocation2] sm:$0xff]
    %v25 = vld [vmem:[#allocation2 + $0x8] sm:$0xff]
    %v26 = vld [vmem:[%s0] sm:$0xff]
    %28 = vset.pattern.permute.xlu0 0
    %29 = vperm.xlu0 %28, %v26
    %v30 = vpop.permute.xlu0 %29
    %v32 = vsub.f32 %v24, %v30
    %v33 = vsub.f32 %v25, %v30
    %34 = vset.pattern.permute.xlu0 1
    %35 = vperm.xlu0 %34, %v26
    %v36 = vpop.permute.xlu0 %35
    %v38 = vrcp.pop %v36
    %v39 = vmul.f32 %v32, %v38
    %v40 = vmul.f32 %v33, %v38
    %41 = vst [vmem:[#allocation5] sm:$0xff] %v39
    %42 = vst [vmem:[#allocation5 + $0x8] sm:$0xff] %v40
    // Predicated region
    $region14: #{tpu_custom_call.1} parent=1 // pred_check
      _
    $region15: #{tpu_custom_call.1} parent=1 // pred_check_branch
      %44 = sbr.rel (0) target = $region17
    $region16: #{tpu_custom_call.1} parent=1 // pred_region
      %s46 = ssub.s32 256, 256
      %47 = vsyncadd [#allocation4], %s46
      %s49 = sshll.u32 [#allocation5], 4
      %s50 = int_to_ptr.vmem [resolvable:$true] %s49
      %52 = dma.vmem_to_hbm [thread:$0]  %s50, 256, %s2, [#allocation4]
    $region17: #{tpu_custom_call.1} parent=1 // pred_fallthru
      _
    // Predicated region
    $region18: #{tpu_custom_call.1} parent=1 // pred_check
      _
    $region19: #{tpu_custom_call.1} parent=1 // pred_check_branch
      %54 = sbr.rel (0) target = $region21
    $region20: #{tpu_custom_call.1} parent=1 // pred_region
      %55 = dma.done [#allocation4], 256
    $region21: #{tpu_custom_call.1} parent=1 // pred_fallthru
      _
    %56 = vsyncpa [#allocation3], 1
    %57 = vsyncpa [#allocation4], 1

</llo_original>
